<compile_context>
chip_gen: v5e
topology: v5e:2x2
jax: 0.10.0
libtpu: 0.0.40
codegen_flags: <defaults>
</compile_context>

<pallas_src>
import functools

import jax
import jax.numpy as jnp
from jax import lax
from jax.experimental import pallas as pl
from jax.experimental.pallas import tpu as pltpu

LANE = 128
SUBLANE = 8
# HBM-bandwidth-bound elementwise kernel: 1-2 MiB buffers per stream sit near the
# top of the measured mem-bound tiling curve (~86%+ of HBM roofline).
MAX_BLOCK_ROWS_REDUCE = 4096   # mean/sum: 2 inputs x 2 bufs x 2 MiB = 8 MiB VMEM (f32)
MAX_BLOCK_ROWS_NONE = 2048     # none: 3 streams x 2 bufs x 1 MiB = 6 MiB (v5e-safe)


def _focal_elem(x, t, alpha, gamma, binary_targets):
    # Numerically-stable BCE-with-logits, identical to PyTorch's formulation:
    #   bce = max(x, 0) - x*t + log1p(exp(-|x|))
    e = jnp.exp(-jnp.abs(x))
    bce = jnp.maximum(x, 0.0) - x * t + jnp.log1p(e)
    if binary_targets:
        # pt = exp(-bce) = exp(x*t - max(x,0)) / (1 + e).  For t in {0,1} the
        # numerator is a select between 1 and e, and the divide is a single
        # reciprocal -> saves one full exp per element (EUP headroom on v7x).
        num = jnp.where(jnp.logical_xor(x >= 0.0, t > 0.5), e, 1.0)
        pt = num * pl.reciprocal(1.0 + e)   # exact reciprocal; approx=True if ~1e-3 ok
    else:
        pt = jnp.exp(-bce)                  # generic fallback for soft targets
    base = jnp.maximum(1.0 - pt, 0.0)       # guard float-gamma pow vs tiny negatives
    if isinstance(gamma, int) and gamma >= 0:
        w = lax.integer_pow(base, gamma)    # VALU multiplies only
    else:
        w = base ** gamma
    return alpha * w * bce


def _focal_partial_sum_kernel(x_ref, t_ref, o_ref, *, alpha, gamma, binary_targets,
                              block_rows, n_valid):
    x = x_ref[...].astype(jnp.float32)
    t = t_ref[...].astype(jnp.float32)
    fl = _focal_elem(x, t, alpha, gamma, binary_targets)

    def fold(v):
        # (block_rows,128) -> (block_rows//8, 8, 128) keeps the (8,128) minor tile,
        # so this is a layout-free relabel and the reduce is sublane-aligned VALU adds.
        return jnp.sum(v.reshape(block_rows // SUBLANE, SUBLANE, LANE), axis=0)

    if n_valid is None:
        # Fully covered (no padding, no partial block): branch-free everywhere.
        o_ref[...] = fold(fl)
    else:
        i = pl.program_id(0)
        last = pl.num_programs(0) - 1

        @pl.when(i < last)
        def _():                       # hot blocks: no mask
            o_ref[...] = fold(fl)

        @pl.when(i == last)
        def _():                       # ragged tail lives entirely in the last block
            row = lax.broadcasted_iota(jnp.int32, (block_rows, LANE), 0)
            col = lax.broadcasted_iota(jnp.int32, (block_rows, LANE), 1)
            lin = (i * block_rows + row) * LANE + col
            o_ref[...] = fold(jnp.where(lin < n_valid, fl, 0.0))


def _focal_none_kernel(x_ref, t_ref, o_ref, *, alpha, gamma, binary_targets):
    # Elementwise path needs no mask: out-of-bounds rows of a partial last block are
    # dropped by Pallas, and the (<=1023-element) padded tail is sliced off outside.
    x = x_ref[...].astype(jnp.float32)
    t = t_ref[...].astype(jnp.float32)
    o_ref[...] = _focal_elem(x, t, alpha, gamma, binary_targets).astype(o_ref.dtype)


def focal_loss(inputs, targets, alpha=0.1, gamma=3, reduction="mean",
               binary_targets=True):
    orig_shape = inputs.shape
    x = inputs.reshape(-1)   # native dtype; f32 cast happens in-kernel
    t = targets.reshape(-1)
    n = x.shape[0]

    # Trace-time gamma normalization: gamma=3.0/2.0 would otherwise lower `** gamma`
    # to exp(gamma*log(base)) -- two extra EUP ops per element.
    if isinstance(gamma, (int, float)) and float(gamma).is_integer():
        gamma = int(gamma)

    r0 = -(-n // LANE)                       # rows of 128 lanes
    rows = -(-r0 // SUBLANE) * SUBLANE       # sublane-aligned: at most +7 rows

    max_rows = MAX_BLOCK_ROWS_REDUCE if reduction in ("mean", "sum") else MAX_BLOCK_ROWS_NONE
    block_rows = rows if rows <= max_rows else max_rows
    num_blocks = -(-rows // block_rows)      # partial last block is allowed

    pad = rows * LANE - n
    if pad:
        # At most SUBLANE*LANE - 1 = 1023 dead elements (needed for the lane-dense
        # (rows,128) view); lane/sublane-aligned sizes pay zero here.
        x = jnp.pad(x, (0, pad))
        t = jnp.pad(t, (0, pad))
    x2 = x.reshape(rows, LANE)
    t2 = t.reshape(rows, LANE)

    # Mask only needed if the grid covers more elements than n (pad and/or overhang).
    covered = num_blocks * block_rows * LANE
    n_valid = n if covered != n else None

    in_blk = pl.BlockSpec((block_rows, LANE), lambda i: (i, 0))
    # NOTE(v7x): "parallel" should let Mosaic shard the 1-D grid across both
    # TensorCores; if a trace shows it running on one TC, switch to pltpu.CORE_PARALLEL.
    cparams = pltpu.CompilerParams(dimension_semantics=("parallel",))

    if reduction in ("mean", "sum"):
        kern = functools.partial(
            _focal_partial_sum_kernel, alpha=alpha, gamma=gamma,
            binary_targets=binary_targets, block_rows=block_rows, n_valid=n_valid)
        partials = pl.pallas_call(
            kern,
            out_shape=jax.ShapeDtypeStruct((num_blocks * SUBLANE, LANE), jnp.float32),
            grid_spec=pltpu.PrefetchScalarGridSpec(
                num_scalar_prefetch=0,
                grid=(num_blocks,),
                in_specs=[in_blk, in_blk],
                out_specs=pl.BlockSpec((SUBLANE, LANE), lambda i: (i, 0)),
            ),
            compiler_params=cparams,
        )(x2, t2)
        total = jnp.sum(partials)  # tiny (num_blocks*8*128) final reduce in XLA
        if reduction == "mean":
            return total / n
        return total
    else:  # reduction == 'none'
        kern = functools.partial(
            _focal_none_kernel, alpha=alpha, gamma=gamma, binary_targets=binary_targets)
        out = pl.pallas_call(
            kern,
            out_shape=jax.ShapeDtypeStruct((rows, LANE), inputs.dtype),
            grid_spec=pltpu.PrefetchScalarGridSpec(
                num_scalar_prefetch=0,
                grid=(num_blocks,),
                in_specs=[in_blk, in_blk],
                out_specs=in_blk,
            ),
            compiler_params=cparams,
        )(x2, t2)
        if pad:
            return out.reshape(-1)[:n].reshape(orig_shape)
        return out.reshape(orig_shape)


def _focal_loss_ref(inputs, targets, alpha=0.1, gamma=3, reduction="mean"):
    x = inputs.astype(jnp.float32)
    t = targets.astype(jnp.float32)
    bce = jnp.maximum(x, 0.0) - x * t + jnp.log1p(jnp.exp(-jnp.abs(x)))
    pt = jnp.exp(-bce)
    fl = alpha * (1.0 - pt) ** gamma * bce
    if reduction == "mean":
        return jnp.mean(fl)
    elif reduction == "sum":
        return jnp.sum(fl)
    return fl


if __name__ == "__main__":
    key = jax.random.PRNGKey(0)
    k1, k2 = jax.random.split(key)
    # NCHW logits and binary targets, as the FocalLoss module expects.
    inputs = jax.random.normal(k1, (2, 4, 16, 16), dtype=jnp.float32) * 2.0
    targets = (jax.random.uniform(k2, (2, 4, 16, 16)) > 0.5).astype(jnp.float32)

    # mean (default module config)
    out = jax.block_until_ready(focal_loss(inputs, targets, alpha=0.1, gamma=3))
    ref = _focal_loss_ref(inputs, targets, alpha=0.1, gamma=3, reduction="mean")
    assert jnp.allclose(out, ref, rtol=1e-5, atol=1e-5), (out, ref)

    # sum (and float-valued integer gamma -> int normalization path)
    out_s = jax.block_until_ready(focal_loss(inputs, targets, gamma=2.0, reduction="sum"))
    ref_s = _focal_loss_ref(inputs, targets, gamma=2, reduction="sum")
    assert jnp.allclose(out_s, ref_s, rtol=1e-5, atol=1e-5), (out_s, ref_s)

    # none
    out_n = jax.block_until_ready(focal_loss(inputs, targets, reduction="none"))
    ref_n = _focal_loss_ref(inputs, targets, reduction="none")
    assert jnp.allclose(out_n, ref_n, rtol=1e-5, atol=1e-5)

    # generic (non-binary-specialized) pt fallback
    out_g = jax.block_until_ready(
        focal_loss(inputs, targets, reduction="mean", binary_targets=False))
    assert jnp.allclose(out_g, ref, rtol=1e-5, atol=1e-5), (out_g, ref)

    # odd shape: sublane pad + in-kernel tail mask, single block
    k3, k4 = jax.random.split(k2)
    xi = jax.random.normal(k3, (3, 5, 7, 11), dtype=jnp.float32)
    ti = (jax.random.uniform(k4, (3, 5, 7, 11)) > 0.5).astype(jnp.float32)
    out_p = jax.block_until_ready(focal_loss(xi, ti, reduction="mean"))
    ref_p = _focal_loss_ref(xi, ti, reduction="mean")
    assert jnp.allclose(out_p, ref_p, rtol=1e-5, atol=1e-5), (out_p, ref_p)

    # larger ragged shape: multi-block grid + partial last block + tail mask
    k5, k6 = jax.random.split(k4)
    xl = jax.random.normal(k5, (6, 4, 150, 150), dtype=jnp.float32)
    tl = (jax.random.uniform(k6, (6, 4, 150, 150)) > 0.5).astype(jnp.float32)
    out_l = jax.block_until_ready(focal_loss(xl, tl, reduction="mean"))
    ref_l = _focal_loss_ref(xl, tl, reduction="mean")
    assert jnp.allclose(out_l, ref_l, rtol=1e-4, atol=1e-6), (out_l, ref_l)

    print("KERNEL_OK")
</pallas_src>

<mosaic_0001>
module attributes {stable_mosaic.version = 11 : i64} {
  func.func @_focal_partial_sum_kernel(%arg0: i32, %arg1: memref<16x128xf32, #tpu.memory_space<vmem>>, %arg2: memref<16x128xf32, #tpu.memory_space<vmem>>, %arg3: memref<8x128xf32, #tpu.memory_space<vmem>>) attributes {dimension_semantics = [#tpu.dimension_semantics<parallel>], iteration_bounds = array<i64: 1>, scalar_prefetch = 0 : i64, scratch_operands = 0 : i64, tpu.core_type = #tpu.core_type<tc>, window_params = [{transform_indices = @transform_0, window_bounds = array<i64: 16, 128>}, {transform_indices = @transform_1, window_bounds = array<i64: 16, 128>}, {transform_indices = @transform_2, window_bounds = array<i64: 8, 128>}]} {
    %c0 = arith.constant 0 : index
    %c0_0 = arith.constant 0 : index
    %0 = vector.load %arg1[%c0, %c0_0] : memref<16x128xf32, #tpu.memory_space<vmem>>, vector<16x128xf32>
    %c0_1 = arith.constant 0 : index
    %c0_2 = arith.constant 0 : index
    %1 = vector.load %arg2[%c0_1, %c0_2] : memref<16x128xf32, #tpu.memory_space<vmem>>, vector<16x128xf32>
    %2 = math.absf %0 : vector<16x128xf32>
    %cst = arith.constant 0.000000e+00 : f32
    %3 = vector.broadcast %cst : f32 to vector<16x128xf32>
    %4 = arith.subf %3, %2 : vector<16x128xf32>
    %5 = math.exp %4 : vector<16x128xf32>
    %cst_3 = arith.constant 0.000000e+00 : f32
    %6 = vector.broadcast %cst_3 : f32 to vector<16x128xf32>
    %7 = arith.maximumf %0, %6 : vector<16x128xf32>
    %8 = arith.mulf %0, %1 : vector<16x128xf32>
    %9 = arith.subf %7, %8 : vector<16x128xf32>
    %10 = math.log1p %5 : vector<16x128xf32>
    %11 = arith.addf %9, %10 : vector<16x128xf32>
    %cst_4 = arith.constant 0.000000e+00 : f32
    %12 = vector.broadcast %cst_4 : f32 to vector<16x128xf32>
    %13 = arith.cmpf oge, %0, %12 : vector<16x128xf32>
    %cst_5 = arith.constant 5.000000e-01 : f32
    %14 = vector.broadcast %cst_5 : f32 to vector<16x128xf32>
    %15 = arith.cmpf ogt, %1, %14 : vector<16x128xf32>
    %16 = arith.xori %13, %15 : vector<16x128xi1>
    %cst_6 = arith.constant 1.000000e+00 : f32
    %17 = vector.broadcast %cst_6 : f32 to vector<16x128xf32>
    %18 = arith.select %16, %5, %17 : vector<16x128xi1>, vector<16x128xf32>
    %cst_7 = arith.constant 1.000000e+00 : f32
    %19 = vector.broadcast %cst_7 : f32 to vector<16x128xf32>
    %20 = arith.addf %19, %5 : vector<16x128xf32>
    %21 = tpu.reciprocal %20 : vector<16x128xf32> -> vector<16x128xf32>
    %22 = arith.mulf %18, %21 : vector<16x128xf32>
    %cst_8 = arith.constant 1.000000e+00 : f32
    %23 = vector.broadcast %cst_8 : f32 to vector<16x128xf32>
    %24 = arith.subf %23, %22 : vector<16x128xf32>
    %cst_9 = arith.constant 0.000000e+00 : f32
    %25 = vector.broadcast %cst_9 : f32 to vector<16x128xf32>
    %26 = arith.maximumf %24, %25 : vector<16x128xf32>
    %27 = arith.mulf %26, %26 : vector<16x128xf32>
    %28 = arith.mulf %26, %27 : vector<16x128xf32>
    %cst_10 = arith.constant 1.000000e-01 : f32
    %29 = vector.broadcast %cst_10 : f32 to vector<16x128xf32>
    %30 = arith.mulf %29, %28 : vector<16x128xf32>
    %31 = arith.mulf %30, %11 : vector<16x128xf32>
    %32 = vector.shape_cast %31 : vector<16x128xf32> to vector<2x8x128xf32>
    %cst_11 = arith.constant dense<0.000000e+00> : vector<8x128xf32>
    %33 = vector.multi_reduction <add>, %32, %cst_11 [0] : vector<2x8x128xf32> to vector<8x128xf32>
    %c0_12 = arith.constant 0 : index
    %c0_13 = arith.constant 0 : index
    %34 = vector.load %arg3[%c0_12, %c0_13] : memref<8x128xf32, #tpu.memory_space<vmem>>, vector<8x128xf32>
    tpu.vector_store %arg3[%c0_12, %c0_13], %33 {strides = array<i32>} : memref<8x128xf32, #tpu.memory_space<vmem>>, vector<8x128xf32>,
    return
  }
  func.func @transform_0(%arg0: i32) -> (i32, i32) {
    %c0_i32 = arith.constant 0 : i32
    %c0_i32_0 = arith.constant 0 : i32
    return %arg0, %c0_i32 : i32, i32
  }
  func.func @transform_1(%arg0: i32) -> (i32, i32) {
    %c0_i32 = arith.constant 0 : i32
    %c0_i32_0 = arith.constant 0 : i32
    return %arg0, %c0_i32 : i32, i32
  }
  func.func @transform_2(%arg0: i32) -> (i32, i32) {
    %c0_i32 = arith.constant 0 : i32
    %c0_i32_0 = arith.constant 0 : i32
    return %arg0, %c0_i32 : i32, i32
  }
}

</mosaic_0001>

<llo_original>
// kernel: tpu_custom_call.1
$region0: #{tpu_custom_call.1}
  #allocation0 [shape = 'u32[]', space=smem, size = 0x4, offset = 0x4, fixed_abs, tag = 'smem constant byte address 0x4 - core index']
  #allocation1 [shape = 'u32[72,128]{1,0:T(1,128)}', space=vmem, size = 0x9000, scoped, tag = 'internal scratch']
  %s0 = inlined_call_operand.hbm [shape: f32[16,128], index: 0, kind: input, shape index: {}]
  %s1 = inlined_call_operand.hbm [shape: f32[16,128], index: 1, kind: input, shape index: {}]
  %s2 = inlined_call_operand.hbm [shape: f32[8,128], index: 2, kind: output, shape index: {}]
  %s3 = sld [smem:[#allocation0]]
  $region26: #{tpu_custom_call.1} parent=0
    _
  %s5 = ssub.s32 1, %s3
  %s6 = scalar_select 0, %s5, %s3
  $region1: #{tpu_custom_call.1} parent=0
    #allocation2 [shape = 'u8[8192]{0}', space=vmem, size = 0x2000, scoped, tag = 'input window, operand 0, single buffered']
    #allocation3 [shape = 's32[1]{0}', space=sflag, size = 0x4, scoped, tag = 'scoped memory for tpu_custom_call.1']
    #allocation4 [shape = 's32[1]{0}', space=sflag, size = 0x4, scoped, tag = 'scoped memory for tpu_custom_call.1']
    #allocation5 [shape = 'u8[8192]{0}', space=vmem, size = 0x2000, scoped, tag = 'input window, operand 1, single buffered']
    #allocation6 [shape = 's32[1]{0}', space=sflag, size = 0x4, scoped, tag = 'scoped memory for tpu_custom_call.1']
    #allocation7 [shape = 'u8[4096]{0}', space=vmem, size = 0x1000, scoped, tag = 'output window, operand 0, single buffered']
    %7 = vsyncpa [#allocation3], 0
    %8 = vsyncpa [#allocation6], 0
    %9 = vsyncpa [#allocation4], 0
    // Predicated region
    $region2: #{tpu_custom_call.1} parent=1 // pred_check
      _
    $region3: #{tpu_custom_call.1} parent=1 // pred_check_branch
      %11 = sbr.rel (0) target = $region5
    $region4: #{tpu_custom_call.1} parent=1 // pred_region
      %13 = vsyncadd [#allocation3], 0
      %s14 = sshll.u32 %s0, 4
      %s15 = int_to_ptr.hbm [resolvable:$true] %s14
      %s16 = sshll.u32 [#allocation2], 4
      %s17 = int_to_ptr.vmem [resolvable:$true] %s16
      %22 = dma.hbm_to_vmem [thread:$0]  %s15, 256, %s17, [#allocation3], 128, 128, 8
    $region5: #{tpu_custom_call.1} parent=1 // pred_fallthru
      _
    // Predicated region
    $region6: #{tpu_custom_call.1} parent=1 // pred_check
      _
    $region7: #{tpu_custom_call.1} parent=1 // pred_check_branch
      %24 = sbr.rel (0) target = $region9
    $region8: #{tpu_custom_call.1} parent=1 // pred_region
      %26 = vsyncadd [#allocation6], 0
      %s27 = sshll.u32 %s1, 4
      %s28 = int_to_ptr.hbm [resolvable:$true] %s27
      %s29 = sshll.u32 [#allocation5], 4
      %s30 = int_to_ptr.vmem [resolvable:$true] %s29
      %35 = dma.hbm_to_vmem [thread:$0]  %s28, 256, %s30, [#allocation6], 128, 128, 8
    $region9: #{tpu_custom_call.1} parent=1 // pred_fallthru
      _
    // Predicated region
    $region10: #{tpu_custom_call.1} parent=1 // pred_check
      _
    $region11: #{tpu_custom_call.1} parent=1 // pred_check_branch
      %37 = sbr.rel (0) target = $region13
    $region12: #{tpu_custom_call.1} parent=1 // pred_region
      %39 = dma.done [#allocation3], 256
    $region13: #{tpu_custom_call.1} parent=1 // pred_fallthru
      _
    // Predicated region
    $region14: #{tpu_custom_call.1} parent=1 // pred_check
      _
    $region15: #{tpu_custom_call.1} parent=1 // pred_check_branch
      %41 = sbr.rel (0) target = $region17
    $region16: #{tpu_custom_call.1} parent=1 // pred_region
      %43 = dma.done [#allocation6], 256
    $region17: #{tpu_custom_call.1} parent=1 // pred_fallthru
      _
    %v44 = vld [vmem:[#allocation2] sm:$0xff]
    %v45 = vld [vmem:[#allocation2 + $0x8] sm:$0xff]
    %v46 = vld [vmem:[#allocation5] sm:$0xff]
    %v47 = vld [vmem:[#allocation5 + $0x8] sm:$0xff]
    %v48 = vand.u32 2147483647, %v44
    %v49 = vand.u32 2147483647, %v45
    %v50 = vsub.f32 0.0, %v48
    %v51 = vsub.f32 0.0, %v49
    %v52 = vmul.f32 %v50, 1.442695
    %v53 = vpow.pop %v52
    %v54 = vmul.f32 %v51, 1.442695
    %v55 = vpow.pop %v54
    %v56 = vmax.f32 %v44, 0.0
    %v57 = vmax.f32 %v45, 0.0
    %v58 = vmul.f32 %v44, %v46
    %v59 = vmul.f32 %v45, %v47
    %v60 = vsub.f32 %v56, %v58
    %v61 = vsub.f32 %v57, %v59
    %v62 = vadd.f32 %v53, 1.0
    %v63 = vlog2.pop %v62
    %v64 = vmul.f32 %v63, 0.6931472
    %v65 = vmul.f32 -0.5, %v53
    %v66 = vadd.f32 %v65, 1.0
    %v67 = vmul.f32 %v66, %v53
    %v68 = vand.u32 2147483647, %v53
    %vm69 = vcmp.lt.f32.partialorder %v68, 0.0004427343
    %v70 = vsel %vm69, %v67, %v64
    %v71 = vadd.f32 %v55, 1.0
    %v72 = vlog2.pop %v71
    %v73 = vmul.f32 %v72, 0.6931472
    %v74 = vmul.f32 -0.5, %v55
    %v75 = vadd.f32 %v74, 1.0
    %v76 = vmul.f32 %v75, %v55
    %v77 = vand.u32 2147483647, %v55
    %vm78 = vcmp.lt.f32.partialorder %v77, 0.0004427343
    %v79 = vsel %vm78, %v76, %v73
    %v80 = vadd.f32 %v60, %v70
    %v81 = vadd.f32 %v61, %v79
    %vm82 = vcmp.ge.f32.partialorder %v44, 0.0
    %vm83 = vcmp.ge.f32.partialorder %v45, 0.0
    %vm84 = vcmp.gt.f32.partialorder %v46, 0.5
    %vm85 = vcmp.gt.f32.partialorder %v47, 0.5
    %vm86 = vmxor %vm82, %vm84
    %vm87 = vmxor %vm83, %vm85
    %v88 = vsel %vm86, %v53, 1.0
    %v89 = vsel %vm87, %v55, 1.0
    %v90 = vadd.f32 %v53, 1.0
    %v91 = vadd.f32 %v55, 1.0
    %v92 = vrcp.pop %v90
    %v93 = vmul.f32 %v90, %v92
    %v94 = vsub.f32 1.0, %v93
    %v95 = vmul.f32 %v92, %v94
    %v96 = vadd.f32 %v92, %v95
    %vm97 = vweird.f32 %v90
    %vm98 = vweird.f32 %v92
    %vm99 = vmor %vm97, %vm98
    %v100 = vsel %vm99, %v92, %v96
    %v101 = vand.u32 2147483647, %v90
    %vm102 = vcmp.eq.f32.partialorder %v101, 8.507059e+37
    %v103 = vand.u32 %v90, 2147483648
    %v104 = vor.u32 1.1754944e-38, %v103
    %v105 = vsel %vm102, %v104, %v100
    %v106 = vrcp.pop %v91
    %v107 = vmul.f32 %v91, %v106
    %v108 = vsub.f32 1.0, %v107
    %v109 = vmul.f32 %v106, %v108
    %v110 = vadd.f32 %v106, %v109
    %vm111 = vweird.f32 %v91
    %vm112 = vweird.f32 %v106
    %vm113 = vmor %vm111, %vm112
    %v114 = vsel %vm113, %v106, %v110
    %v115 = vand.u32 2147483647, %v91
    %vm116 = vcmp.eq.f32.partialorder %v115, 8.507059e+37
    %v117 = vand.u32 %v91, 2147483648
    %v118 = vor.u32 1.1754944e-38, %v117
    %v119 = vsel %vm116, %v118, %v114
    %v120 = vmul.f32 %v88, %v105
    %v121 = vmul.f32 %v89, %v119
    %v122 = vsub.f32 1.0, %v120
    %v123 = vsub.f32 1.0, %v121
    %v124 = vmax.f32 %v122, 0.0
    %v125 = vmax.f32 %v123, 0.0
    %v126 = vmul.f32 %v124, %v124
    %v127 = vmul.f32 %v125, %v125
    %v128 = vmul.f32 %v124, %v126
    %v129 = vmul.f32 %v125, %v127
    %v130 = vmul.f32 %v128, 0.1
    %v131 = vmul.f32 %v129, 0.1
    %v132 = vmul.f32 %v130, %v80
    %v133 = vmul.f32 %v131, %v81
    %v134 = vadd.f32 %v132, %v133
    %135 = vst [vmem:[#allocation7] sm:$0xff] %v134
    // Predicated region
    $region18: #{tpu_custom_call.1} parent=1 // pred_check
      _
    $region19: #{tpu_custom_call.1} parent=1 // pred_check_branch
      %137 = sbr.rel (0) target = $region21
    $region20: #{tpu_custom_call.1} parent=1 // pred_region
      %139 = vsyncadd [#allocation4], 0
      %s141 = sshll.u32 [#allocation7], 4
      %s142 = int_to_ptr.vmem [resolvable:$true] %s141
      %s143 = sshll.u32 %s2, 4
      %s144 = int_to_ptr.hbm [resolvable:$true] %s143
      %146 = dma.vmem_to_hbm [thread:$0]  %s142, 128, %s144, [#allocation4]
    $region21: #{tpu_custom_call.1} parent=1 // pred_fallthru
      _
    // Predicated region
    $region22: #{tpu_custom_call.1} parent=1 // pred_check
      _
    $region23: #{tpu_custom_call.1} parent=1 // pred_check_branch
      %148 = sbr.rel (0) target = $region25
    $region24: #{tpu_custom_call.1} parent=1 // pred_region
      %150 = dma.done [#allocation4], 128
    $region25: #{tpu_custom_call.1} parent=1 // pred_fallthru
      _
    %151 = vsyncpa [#allocation3], 1
    %152 = vsyncpa [#allocation6], 1
    %153 = vsyncpa [#allocation4], 1

</llo_original>
